<compile_context>
chip_gen: v6e
topology: v6e:2x2x1
jax: 0.10.0
libtpu: 0.0.40
codegen_flags: <defaults>
</compile_context>

<pallas_src>
import jax
import jax.numpy as jnp
from jax.experimental import pallas as pl
from jax.experimental.pallas import tpu as pltpu


# ----------------------------------------------------------------------------
# Pallas kernel: one grid step = one network (0 = actor, 1 = critic).
# The leading "network" axis of every weight/bias is squeezed by the BlockSpec,
# so the body sees plain 2-D tiles and runs the full 2-hidden-layer tanh MLP
# plus the (lane-padded) linear head on the MXU/VPU in one shot.
# ----------------------------------------------------------------------------
def _fused_mlp_kernel(x_ref, w1_ref, b1_ref, w2_ref, b2_ref, w3_ref, b3_ref, o_ref):
    x = x_ref[...]
    h = jnp.tanh(
        jnp.dot(x, w1_ref[...], preferred_element_type=jnp.float32) + b1_ref[...]
    )
    h = jnp.tanh(
        jnp.dot(h, w2_ref[...], preferred_element_type=jnp.float32) + b2_ref[...]
    )
    # Full [B, 128] lane-dense store (head weights are zero-padded to 128 lanes).
    o_ref[...] = (
        jnp.dot(h, w3_ref[...], preferred_element_type=jnp.float32) + b3_ref[...]
    )


OUT_PAD = 128  # lane-dense padded head width


def _make_fused_forward(logits_dim):
    """Build a jitted forward: (obs, stacked_params) -> (logits, value, nan_flag)."""

    @jax.jit
    def fused_forward(obs, params):
        w1, b1, w2, b2, w3, b3 = params
        batch, obs_dim = obs.shape
        hidden = w1.shape[-1]
        out_pad = w3.shape[-1]

        cost = pl.CostEstimate(
            flops=2 * 2 * batch * (obs_dim * hidden + hidden * hidden + hidden * out_pad),
            transcendentals=2 * 2 * batch * hidden,
            bytes_accessed=4
            * (
                obs.size
                + w1.size + b1.size + w2.size + b2.size + w3.size + b3.size
                + 2 * batch * out_pad
            ),
        )

        packed = pl.pallas_call(
            _fused_mlp_kernel,
            out_shape=jax.ShapeDtypeStruct((2, batch, out_pad), jnp.float32),
            grid_spec=pltpu.PrefetchScalarGridSpec(
                num_scalar_prefetch=0,
                grid=(2,),  # 0 = actor, 1 = critic
                in_specs=[
                    # obs: same block for both networks -> fetched once.
                    pl.BlockSpec((batch, obs_dim), lambda i: (0, 0)),
                    # per-network weights/biases: leading axis selected by grid,
                    # squeezed out of the kernel view.
                    pl.BlockSpec((None, obs_dim, hidden), lambda i: (i, 0, 0)),
                    pl.BlockSpec((None, 1, hidden), lambda i: (i, 0, 0)),
                    pl.BlockSpec((None, hidden, hidden), lambda i: (i, 0, 0)),
                    pl.BlockSpec((None, 1, hidden), lambda i: (i, 0, 0)),
                    pl.BlockSpec((None, hidden, out_pad), lambda i: (i, 0, 0)),
                    pl.BlockSpec((None, 1, out_pad), lambda i: (i, 0, 0)),
                ],
                out_specs=pl.BlockSpec((None, batch, out_pad), lambda i: (i, 0, 0)),
            ),
            compiler_params=pltpu.CompilerParams(
                # Two independent networks -> megacore-parallel on v7x;
                # plain cheap 2-step loop on v5e/v6e.
                dimension_semantics=("parallel",),
            ),
            cost_estimate=cost,
        )(obs, w1, b1, w2, b2, w3, b3)

        logits = packed[0, :, :logits_dim]
        value = packed[1, :, 0]
        # Device-side replacement for the host-blocking NaN assert.
        nan_flag = jnp.any(jnp.isnan(obs))
        return logits, value, nan_flag

    return fused_forward


# ----------------------------------------------------------------------------
# Parameter construction (deterministic, in-script; mirrors TorchFC shapes for
# fcnet_hiddens=[H, H] with tanh activation).
# ----------------------------------------------------------------------------
def make_fcnet_params(key, in_dim, hidden, out_dim):
    ks = jax.random.split(key, 6)
    scale = lambda fan_in: 1.0 / jnp.sqrt(jnp.float32(fan_in))
    w1 = jax.random.normal(ks[0], (in_dim, hidden), jnp.float32) * scale(in_dim)
    b1 = jax.random.normal(ks[1], (1, hidden), jnp.float32) * 0.01
    w2 = jax.random.normal(ks[2], (hidden, hidden), jnp.float32) * scale(hidden)
    b2 = jax.random.normal(ks[3], (1, hidden), jnp.float32) * 0.01
    w3 = jax.random.normal(ks[4], (hidden, out_dim), jnp.float32) * scale(hidden)
    b3 = jax.random.normal(ks[5], (1, out_dim), jnp.float32) * 0.01
    return (w1, b1, w2, b2, w3, b3)


def _pad_head(w, b, out_pad):
    hidden, out_dim = w.shape
    wp = jnp.zeros((hidden, out_pad), jnp.float32).at[:, :out_dim].set(w)
    bp = jnp.zeros((1, out_pad), jnp.float32).at[:, :out_dim].set(b)
    return wp, bp


def stack_and_pad_params(actor_params, critic_params, out_pad=OUT_PAD):
    a_w1, a_b1, a_w2, a_b2, a_w3, a_b3 = actor_params
    c_w1, c_b1, c_w2, c_b2, c_w3, c_b3 = critic_params
    a_w3p, a_b3p = _pad_head(a_w3, a_b3, out_pad)
    c_w3p, c_b3p = _pad_head(c_w3, c_b3, out_pad)
    return (
        jnp.stack([a_w1, c_w1]),
        jnp.stack([a_b1, c_b1]),
        jnp.stack([a_w2, c_w2]),
        jnp.stack([a_b2, c_b2]),
        jnp.stack([a_w3p, c_w3p]),
        jnp.stack([a_b3p, c_b3p]),
    )


class SimpleCustomModelPallas:
    """JAX/Pallas re-implementation of SimpleCustomTorchModel's forward pass."""

    def __init__(self, obs_dim, act_dim, hidden, key):
        ka, kc = jax.random.split(key)
        # actor head: act_dim * 2 outputs (means + log_stds); critic head: 1.
        self.actor_params = make_fcnet_params(ka, obs_dim, hidden, act_dim * 2)
        self.critic_params = make_fcnet_params(kc, obs_dim, hidden, 1)
        self.stacked_params = stack_and_pad_params(self.actor_params, self.critic_params)
        self.logits_dim = act_dim * 2
        self._fused_forward = _make_fused_forward(self.logits_dim)
        self.value = None
        self.obs_nan_flag = None  # device-side flag; sync only when desired
        self.log_step = 0

    def forward(self, input_dict, state, seq_lens):
        obs = input_dict["obs_flat"]
        logits, value, nan_flag = self._fused_forward(obs, self.stacked_params)
        # No per-step host sync: the NaN flag stays on device; callers can pull
        # it occasionally (see __main__) instead of blocking every step.
        self.obs_nan_flag = nan_flag
        self.value = value
        self.log_step += 1
        # TODO(synk): per-index NaN diagnostic printing (means vs log_stds) has no
        # in-kernel equivalent; a whole-tensor NaN flag on logits could be added
        # the same way as obs_nan_flag if needed.
        return logits, state

    def value_function(self):
        # value is already [B] (squeeze folded into the packed-output slicing).
        return self.value


# ----------------------------------------------------------------------------
# Pure-JAX reference for correctness.
# ----------------------------------------------------------------------------
def mlp_ref(x, params):
    w1, b1, w2, b2, w3, b3 = params
    h = jnp.tanh(x @ w1 + b1)
    h = jnp.tanh(h @ w2 + b2)
    return h @ w3 + b3


if __name__ == "__main__":
    B, OBS_DIM, ACT_DIM, HIDDEN = 8, 16, 4, 32

    key = jax.random.PRNGKey(0)
    k_obs, k_model = jax.random.split(key)
    obs = jax.random.normal(k_obs, (B, OBS_DIM), jnp.float32)

    model = SimpleCustomModelPallas(OBS_DIM, ACT_DIM, HIDDEN, k_model)

    logits, state = model.forward({"obs_flat": obs}, state=[], seq_lens=None)
    value = model.value_function()

    logits = jax.block_until_ready(logits)
    value = jax.block_until_ready(value)

    # Occasional host-side check of the device-computed NaN flag (single sync).
    assert not bool(model.obs_nan_flag), "nan in the observations"

    # sanity checks against the pure-JAX reference
    logits_ref = mlp_ref(obs, model.actor_params)
    value_ref = mlp_ref(obs, model.critic_params).squeeze(-1)
    assert logits.shape == (B, ACT_DIM * 2)
    assert value.shape == (B,)
    assert state == []
    assert jnp.allclose(logits, logits_ref, atol=1e-5, rtol=1e-5)
    assert jnp.allclose(value, value_ref, atol=1e-5, rtol=1e-5)

    print("KERNEL_OK")
</pallas_src>

<mosaic_0001>
module attributes {stable_mosaic.version = 11 : i64} {
  func.func @_fused_mlp_kernel(%arg0: i32, %arg1: memref<8x16xf32, #tpu.memory_space<vmem>>, %arg2: memref<1x16x32xf32, #tpu.memory_space<vmem>>, %arg3: memref<1x1x32xf32, #tpu.memory_space<vmem>>, %arg4: memref<1x32x32xf32, #tpu.memory_space<vmem>>, %arg5: memref<1x1x32xf32, #tpu.memory_space<vmem>>, %arg6: memref<1x32x128xf32, #tpu.memory_space<vmem>>, %arg7: memref<1x1x128xf32, #tpu.memory_space<vmem>>, %arg8: memref<1x8x128xf32, #tpu.memory_space<vmem>>) attributes {dimension_semantics = [#tpu.dimension_semantics<parallel>], iteration_bounds = array<i64: 2>, scalar_prefetch = 0 : i64, scratch_operands = 0 : i64, tpu.core_type = #tpu.core_type<tc>, window_params = [{pipeline_mode = #tpu.pipeline_mode<synchronous>, transform_indices = @transform_0, window_bounds = array<i64: 8, 16>}, {transform_indices = @transform_1, window_bounds = array<i64: 1, 16, 32>}, {transform_indices = @transform_2, window_bounds = array<i64: 1, 1, 32>}, {transform_indices = @transform_3, window_bounds = array<i64: 1, 32, 32>}, {transform_indices = @transform_4, window_bounds = array<i64: 1, 1, 32>}, {transform_indices = @transform_5, window_bounds = array<i64: 1, 32, 128>}, {transform_indices = @transform_6, window_bounds = array<i64: 1, 1, 128>}, {transform_indices = @transform_7, window_bounds = array<i64: 1, 8, 128>}]} {
    %c0 = arith.constant 0 : index
    %c0_0 = arith.constant 0 : index
    %0 = vector.load %arg1[%c0, %c0_0] : memref<8x16xf32, #tpu.memory_space<vmem>>, vector<8x16xf32>
    %c0_1 = arith.constant 0 : index
    %c0_2 = arith.constant 0 : index
    %c0_3 = arith.constant 0 : index
    %1 = vector.load %arg2[%c0_1, %c0_2, %c0_3] : memref<1x16x32xf32, #tpu.memory_space<vmem>>, vector<1x16x32xf32>
    %2 = vector.shape_cast %1 : vector<1x16x32xf32> to vector<16x32xf32>
    %cst = arith.constant dense<0.000000e+00> : vector<8x32xf32>
    %3 = tpu.matmul %0, %2, %cst {dimension_numbers = #tpu.dot_dimension_numbers<[1], [0], [0], [1], [0, 0, 1, 1], [], []>} : vector<8x16xf32>, vector<16x32xf32>, vector<8x32xf32> -> vector<8x32xf32>
    %c0_4 = arith.constant 0 : index
    %c0_5 = arith.constant 0 : index
    %c0_6 = arith.constant 0 : index
    %4 = vector.load %arg3[%c0_4, %c0_5, %c0_6] : memref<1x1x32xf32, #tpu.memory_space<vmem>>, vector<1x1x32xf32>
    %5 = vector.shape_cast %4 : vector<1x1x32xf32> to vector<1x32xf32>
    %6 = vector.broadcast %5 : vector<1x32xf32> to vector<8x32xf32>
    %7 = arith.addf %3, %6 : vector<8x32xf32>
    %8 = math.tanh %7 : vector<8x32xf32>
    %c0_7 = arith.constant 0 : index
    %c0_8 = arith.constant 0 : index
    %c0_9 = arith.constant 0 : index
    %9 = vector.load %arg4[%c0_7, %c0_8, %c0_9] : memref<1x32x32xf32, #tpu.memory_space<vmem>>, vector<1x32x32xf32>
    %10 = vector.shape_cast %9 : vector<1x32x32xf32> to vector<32x32xf32>
    %cst_10 = arith.constant dense<0.000000e+00> : vector<8x32xf32>
    %11 = tpu.matmul %8, %10, %cst_10 {dimension_numbers = #tpu.dot_dimension_numbers<[1], [0], [0], [1], [0, 0, 1, 1], [], []>} : vector<8x32xf32>, vector<32x32xf32>, vector<8x32xf32> -> vector<8x32xf32>
    %c0_11 = arith.constant 0 : index
    %c0_12 = arith.constant 0 : index
    %c0_13 = arith.constant 0 : index
    %12 = vector.load %arg5[%c0_11, %c0_12, %c0_13] : memref<1x1x32xf32, #tpu.memory_space<vmem>>, vector<1x1x32xf32>
    %13 = vector.shape_cast %12 : vector<1x1x32xf32> to vector<1x32xf32>
    %14 = vector.broadcast %13 : vector<1x32xf32> to vector<8x32xf32>
    %15 = arith.addf %11, %14 : vector<8x32xf32>
    %16 = math.tanh %15 : vector<8x32xf32>
    %c0_14 = arith.constant 0 : index
    %c0_15 = arith.constant 0 : index
    %c0_16 = arith.constant 0 : index
    %17 = vector.load %arg6[%c0_14, %c0_15, %c0_16] : memref<1x32x128xf32, #tpu.memory_space<vmem>>, vector<1x32x128xf32>
    %18 = vector.shape_cast %17 : vector<1x32x128xf32> to vector<32x128xf32>
    %cst_17 = arith.constant dense<0.000000e+00> : vector<8x128xf32>
    %19 = tpu.matmul %16, %18, %cst_17 {dimension_numbers = #tpu.dot_dimension_numbers<[1], [0], [0], [1], [0, 0, 1, 1], [], []>} : vector<8x32xf32>, vector<32x128xf32>, vector<8x128xf32> -> vector<8x128xf32>
    %c0_18 = arith.constant 0 : index
    %c0_19 = arith.constant 0 : index
    %c0_20 = arith.constant 0 : index
    %20 = vector.load %arg7[%c0_18, %c0_19, %c0_20] : memref<1x1x128xf32, #tpu.memory_space<vmem>>, vector<1x1x128xf32>
    %21 = vector.shape_cast %20 : vector<1x1x128xf32> to vector<1x128xf32>
    %22 = vector.broadcast %21 : vector<1x128xf32> to vector<8x128xf32>
    %23 = arith.addf %19, %22 : vector<8x128xf32>
    %c0_21 = arith.constant 0 : index
    %c0_22 = arith.constant 0 : index
    %c0_23 = arith.constant 0 : index
    %24 = vector.load %arg8[%c0_21, %c0_22, %c0_23] : memref<1x8x128xf32, #tpu.memory_space<vmem>>, vector<1x8x128xf32>
    %25 = vector.shape_cast %24 : vector<1x8x128xf32> to vector<8x128xf32>
    %26 = vector.shape_cast %23 : vector<8x128xf32> to vector<1x8x128xf32>
    tpu.vector_store %arg8[%c0_21, %c0_22, %c0_23], %26 {strides = array<i32>} : memref<1x8x128xf32, #tpu.memory_space<vmem>>, vector<1x8x128xf32>,
    return
  }
  func.func @transform_0(%arg0: i32) -> (i32, i32) {
    %c0_i32 = arith.constant 0 : i32
    %c0_i32_0 = arith.constant 0 : i32
    %c0_i32_1 = arith.constant 0 : i32
    return %c0_i32, %c0_i32_0 : i32, i32
  }
  func.func @transform_1(%arg0: i32) -> (i32, i32, i32) {
    %c0_i32 = arith.constant 0 : i32
    %c0_i32_0 = arith.constant 0 : i32
    %c0_i32_1 = arith.constant 0 : i32
    return %arg0, %c0_i32, %c0_i32_0 : i32, i32, i32
  }
  func.func @transform_2(%arg0: i32) -> (i32, i32, i32) {
    %c0_i32 = arith.constant 0 : i32
    %c0_i32_0 = arith.constant 0 : i32
    %c0_i32_1 = arith.constant 0 : i32
    return %arg0, %c0_i32, %c0_i32_0 : i32, i32, i32
  }
  func.func @transform_3(%arg0: i32) -> (i32, i32, i32) {
    %c0_i32 = arith.constant 0 : i32
    %c0_i32_0 = arith.constant 0 : i32
    %c0_i32_1 = arith.constant 0 : i32
    return %arg0, %c0_i32, %c0_i32_0 : i32, i32, i32
  }
  func.func @transform_4(%arg0: i32) -> (i32, i32, i32) {
    %c0_i32 = arith.constant 0 : i32
    %c0_i32_0 = arith.constant 0 : i32
    %c0_i32_1 = arith.constant 0 : i32
    return %arg0, %c0_i32, %c0_i32_0 : i32, i32, i32
  }
  func.func @transform_5(%arg0: i32) -> (i32, i32, i32) {
    %c0_i32 = arith.constant 0 : i32
    %c0_i32_0 = arith.constant 0 : i32
    %c0_i32_1 = arith.constant 0 : i32
    return %arg0, %c0_i32, %c0_i32_0 : i32, i32, i32
  }
  func.func @transform_6(%arg0: i32) -> (i32, i32, i32) {
    %c0_i32 = arith.constant 0 : i32
    %c0_i32_0 = arith.constant 0 : i32
    %c0_i32_1 = arith.constant 0 : i32
    return %arg0, %c0_i32, %c0_i32_0 : i32, i32, i32
  }
  func.func @transform_7(%arg0: i32) -> (i32, i32, i32) {
    %c0_i32 = arith.constant 0 : i32
    %c0_i32_0 = arith.constant 0 : i32
    %c0_i32_1 = arith.constant 0 : i32
    return %arg0, %c0_i32, %c0_i32_0 : i32, i32, i32
  }
}

</mosaic_0001>

<llo_original>
// kernel: fused_forward.1
$region0: #{fused_forward.1}
  #allocation0 [shape = 'u32[]', space=smem, size = 0x4, offset = 0x4, fixed_abs, tag = 'smem constant byte address 0x4 - core index']
  #allocation1 [shape = 'u32[144,128]{1,0:T(1,128)}', space=vmem, size = 0x12000, scoped, tag = 'internal scratch']
  %s0 = inlined_call_operand.vmem [shape: f32[8,16], index: 0, kind: input, shape index: {}]
  %s1 = inlined_call_operand.hbm [shape: f32[2,16,32], index: 1, kind: input, shape index: {}]
  %s2 = inlined_call_operand.vmem [shape: f32[2,1,32], index: 2, kind: input, shape index: {}]
  %s3 = inlined_call_operand.hbm [shape: f32[2,32,32], index: 3, kind: input, shape index: {}]
  %s4 = inlined_call_operand.hbm [shape: f32[2,1,32], index: 4, kind: input, shape index: {}]
  %s5 = inlined_call_operand.hbm [shape: f32[2,32,128], index: 5, kind: input, shape index: {}]
  %s6 = inlined_call_operand.hbm [shape: f32[2,1,128], index: 6, kind: input, shape index: {}]
  %s7 = inlined_call_operand.vmem [shape: f32[2,8,128], index: 7, kind: output, shape index: {}]
  %s8 = sld [smem:[#allocation0]]
  $region81: #{fused_forward.1} parent=0
    _
  %s10 = ssub.s32 1, %s8
  %s11 = scalar_select 0, %s10, %s8
  $region1: #{fused_forward.1} parent=0
    #allocation2 [shape = 'u8[16384]{0}', space=vmem, size = 0x4000, scoped, tag = 'input window, operand 1']
    #allocation3 [shape = 's32[2]{0}', space=sflag, size = 0x8, scoped, tag = 'scoped memory for fused_forward.1']
    #allocation4 [shape = 'u8[32768]{0}', space=vmem, size = 0x8000, scoped, tag = 'input window, operand 3']
    #allocation5 [shape = 's32[2]{0}', space=sflag, size = 0x8, scoped, tag = 'scoped memory for fused_forward.1']
    #allocation6 [shape = 'u8[1024]{0}', space=vmem, size = 0x400, scoped, tag = 'input window, operand 4']
    #allocation7 [shape = 'u8[32768]{0}', space=vmem, size = 0x8000, scoped, tag = 'input window, operand 5']
    #allocation8 [shape = 's32[2]{0}', space=sflag, size = 0x8, scoped, tag = 'scoped memory for fused_forward.1']
    #allocation9 [shape = 'u8[1024]{0}', space=vmem, size = 0x400, scoped, tag = 'input window, operand 6']
    %12 = vsyncpa [#allocation3], 0
    %s13 = scalar_lea.sflag [#allocation3], 1
    %14 = vsyncpa %s13, 0
    %15 = vsyncpa [#allocation5], 0
    %s16 = scalar_lea.sflag [#allocation5], 1
    %17 = vsyncpa %s16, 0
    %18 = vsyncpa [#allocation8], 0
    %s19 = scalar_lea.sflag [#allocation8], 1
    %20 = vsyncpa %s19, 0
    loop: start=0, step=1, limit=4
    $region2: #{fused_forward.1} parent=1 // loop_pre_header
      _
    $region3: #{fused_forward.1} parent=1 // loop_header
      %s22 = sphi 0, %s26
      %p23 = scmp.ge.s32.totalorder %s22, 4
      %s30 = sphi 0, %s30
      %s32 = sphi 0, %s30
      %s33 = sphi 0, %s32
      %s47 = sphi 0, %s33
      %s53 = sphi 0, %s55
      %s56 = sphi 0, %s53
      %s57 = sphi 0, %s56
      %s73 = sphi 0, %s57
      %s79 = sphi 0, %s81
      %s82 = sphi 0, %s79
      %s83 = sphi 0, %s82
      %s99 = sphi 0, %s83
      %s105 = sphi 0, %s107
      %s108 = sphi 0, %s105
      %s109 = sphi 0, %s108
      %s125 = sphi 0, %s109
      %s131 = sphi 0, %s133
      %s134 = sphi 0, %s131
      %s135 = sphi 0, %s134
      %s151 = sphi 0, %s135
      %s157 = sphi 0, %s159
      %s160 = sphi 0, %s157
      %s161 = sphi 0, %s160
      %s177 = sphi 0, %s161
      %s183 = sphi 0, %s185
      %s186 = sphi 0, %s183
      %s187 = sphi 0, %s186
      %s203 = sphi 0, %s187
      %s209 = sphi 0, %s211
      %s212 = sphi 0, %s209
      %s213 = sphi 0, %s212
      %s229 = sphi 0, %s213
    $region4: #{fused_forward.1} parent=1 // loop_header_branch
      %25 = sbr.rel (%p23) target = $region8
    $region5: #{fused_forward.1} parent=1 // loop_body
      %s27 = ssub.s32 %s22, 1
      %s28 = ssub.s32 %s22, 2
      %s29 = sadd.s32 %s22, 1
      %s31 = sadd.s32 %s30, 1
      %p34 = scmp.eq.s32.totalorder %s22, 1
      %p35 = scmp.ne.s32.totalorder %s30, %s32
      %p36 = scmp.eq.s32.totalorder %s22, 0
      %p37 = por %p35, %p36
      %p38 = scmp.ne.s32.totalorder %s30, %s32
      %p39 = scmp.eq.s32.totalorder %s27, 1
      %p40 = por %p38, %p39
      %p41 = scmp.ne.s32.totalorder %s32, %s33
      %p42 = scmp.eq.s32.totalorder %s27, 0
      %p43 = por %p41, %p42
      %p44 = scmp.ne.s32.totalorder %s32, %s33
      %p45 = scmp.eq.s32.totalorder %s28, 1
      %p46 = por %p44, %p45
      %p48 = scmp.ne.s32.totalorder %s33, %s47
      %p49 = scmp.eq.s32.totalorder %s28, 0
      %p50 = por %p48, %p49
      %s51 = ssub.s32 %s22, %s29
      %p52 = scmp.eq.s32.totalorder %s51, 0
      %s54 = sadd.s32 %s53, 1
      %s55 = scalar_select %p52, %s53, %s54
      %p58 = pneg %p52
      %p59 = scmp.eq.s32.totalorder %s22, 1
      %p60 = por %p58, %p59
      %p61 = scmp.ne.s32.totalorder %s53, %s56
      %p62 = scmp.eq.s32.totalorder %s22, 0
      %p63 = por %p61, %p62
      %p64 = scmp.ne.s32.totalorder %s53, %s56
      %p65 = scmp.eq.s32.totalorder %s27, 1
      %p66 = por %p64, %p65
      %p67 = scmp.ne.s32.totalorder %s56, %s57
      %p68 = scmp.eq.s32.totalorder %s27, 0
      %p69 = por %p67, %p68
      %p70 = scmp.ne.s32.totalorder %s56, %s57
      %p71 = scmp.eq.s32.totalorder %s28, 1
      %p72 = por %p70, %p71
      %p74 = scmp.ne.s32.totalorder %s57, %s73
      %p75 = scmp.eq.s32.totalorder %s28, 0
      %p76 = por %p74, %p75
      %s77 = ssub.s32 %s22, %s29
      %p78 = scmp.eq.s32.totalorder %s77, 0
      %s80 = sadd.s32 %s79, 1
      %s81 = scalar_select %p78, %s79, %s80
      %p84 = pneg %p78
      %p85 = scmp.eq.s32.totalorder %s22, 1
      %p86 = por %p84, %p85
      %p87 = scmp.ne.s32.totalorder %s79, %s82
      %p88 = scmp.eq.s32.totalorder %s22, 0
      %p89 = por %p87, %p88
      %p90 = scmp.ne.s32.totalorder %s79, %s82
      %p91 = scmp.eq.s32.totalorder %s27, 1
      %p92 = por %p90, %p91
      %p93 = scmp.ne.s32.totalorder %s82, %s83
      %p94 = scmp.eq.s32.totalorder %s27, 0
      %p95 = por %p93, %p94
      %p96 = scmp.ne.s32.totalorder %s82, %s83
      %p97 = scmp.eq.s32.totalorder %s28, 1
      %p98 = por %p96, %p97
      %p100 = scmp.ne.s32.totalorder %s83, %s99
      %p101 = scmp.eq.s32.totalorder %s28, 0
      %p102 = por %p100, %p101
      %s103 = ssub.s32 %s22, %s29
      %p104 = scmp.eq.s32.totalorder %s103, 0
      %s106 = sadd.s32 %s105, 1
      %s107 = scalar_select %p104, %s105, %s106
      %p110 = pneg %p104
      %p111 = scmp.eq.s32.totalorder %s22, 1
      %p112 = por %p110, %p111
      %p113 = scmp.ne.s32.totalorder %s105, %s108
      %p114 = scmp.eq.s32.totalorder %s22, 0
      %p115 = por %p113, %p114
      %p116 = scmp.ne.s32.totalorder %s105, %s108
      %p117 = scmp.eq.s32.totalorder %s27, 1
      %p118 = por %p116, %p117
      %p119 = scmp.ne.s32.totalorder %s108, %s109
      %p120 = scmp.eq.s32.totalorder %s27, 0
      %p121 = por %p119, %p120
      %p122 = scmp.ne.s32.totalorder %s108, %s109
      %p123 = scmp.eq.s32.totalorder %s28, 1
      %p124 = por %p122, %p123
      %p126 = scmp.ne.s32.totalorder %s109, %s125
      %p127 = scmp.eq.s32.totalorder %s28, 0
      %p128 = por %p126, %p127
      %s129 = ssub.s32 %s22, %s29
      %p130 = scmp.eq.s32.totalorder %s129, 0
      %s132 = sadd.s32 %s131, 1
      %s133 = scalar_select %p130, %s131, %s132
      %p136 = pneg %p130
      %p137 = scmp.eq.s32.totalorder %s22, 1
      %p138 = por %p136, %p137
      %p139 = scmp.ne.s32.totalorder %s131, %s134
      %p140 = scmp.eq.s32.totalorder %s22, 0
      %p141 = por %p139, %p140
      %p142 = scmp.ne.s32.totalorder %s131, %s134
      %p143 = scmp.eq.s32.totalorder %s27, 1
      %p144 = por %p142, %p143
      %p145 = scmp.ne.s32.totalorder %s134, %s135
      %p146 = scmp.eq.s32.totalorder %s27, 0
      %p147 = por %p145, %p146
      %p148 = scmp.ne.s32.totalorder %s134, %s135
      %p149 = scmp.eq.s32.totalorder %s28, 1
      %p150 = por %p148, %p149
      %p152 = scmp.ne.s32.totalorder %s135, %s151
      %p153 = scmp.eq.s32.totalorder %s28, 0
      %p154 = por %p152, %p153
      %s155 = ssub.s32 %s22, %s29
      %p156 = scmp.eq.s32.totalorder %s155, 0
      %s158 = sadd.s32 %s157, 1
      %s159 = scalar_select %p156, %s157, %s158
      %p162 = pneg %p156
      %p163 = scmp.eq.s32.totalorder %s22, 1
      %p164 = por %p162, %p163
      %p165 = scmp.ne.s32.totalorder %s157, %s160
      %p166 = scmp.eq.s32.totalorder %s22, 0
      %p167 = por %p165, %p166
      %p168 = scmp.ne.s32.totalorder %s157, %s160
      %p169 = scmp.eq.s32.totalorder %s27, 1
      %p170 = por %p168, %p169
      %p171 = scmp.ne.s32.totalorder %s160, %s161
      %p172 = scmp.eq.s32.totalorder %s27, 0
      %p173 = por %p171, %p172
      %p174 = scmp.ne.s32.totalorder %s160, %s161
      %p175 = scmp.eq.s32.totalorder %s28, 1
      %p176 = por %p174, %p175
      %p178 = scmp.ne.s32.totalorder %s161, %s177
      %p179 = scmp.eq.s32.totalorder %s28, 0
      %p180 = por %p178, %p179
      %s181 = ssub.s32 %s22, %s29
      %p182 = scmp.eq.s32.totalorder %s181, 0
      %s184 = sadd.s32 %s183, 1
      %s185 = scalar_select %p182, %s183, %s184
      %p188 = pneg %p182
      %p189 = scmp.eq.s32.totalorder %s22, 1
      %p190 = por %p188, %p189
      %p191 = scmp.ne.s32.totalorder %s183, %s186
      %p192 = scmp.eq.s32.totalorder %s22, 0
      %p193 = por %p191, %p192
      %p194 = scmp.ne.s32.totalorder %s183, %s186
      %p195 = scmp.eq.s32.totalorder %s27, 1
      %p196 = por %p194, %p195
      %p197 = scmp.ne.s32.totalorder %s186, %s187
      %p198 = scmp.eq.s32.totalorder %s27, 0
      %p199 = por %p197, %p198
      %p200 = scmp.ne.s32.totalorder %s186, %s187
      %p201 = scmp.eq.s32.totalorder %s28, 1
      %p202 = por %p200, %p201
      %p204 = scmp.ne.s32.totalorder %s187, %s203
      %p205 = scmp.eq.s32.totalorder %s28, 0
      %p206 = por %p204, %p205
      %s207 = ssub.s32 %s22, %s29
      %p208 = scmp.eq.s32.totalorder %s207, 0
      %s210 = sadd.s32 %s209, 1
      %s211 = scalar_select %p208, %s209, %s210
      %p214 = pneg %p208
      %p215 = scmp.eq.s32.totalorder %s22, 1
      %p216 = por %p214, %p215
      %p217 = scmp.ne.s32.totalorder %s209, %s212
      %p218 = scmp.eq.s32.totalorder %s22, 0
      %p219 = por %p217, %p218
      %p220 = scmp.ne.s32.totalorder %s209, %s212
      %p221 = scmp.eq.s32.totalorder %s27, 1
      %p222 = por %p220, %p221
      %p223 = scmp.ne.s32.totalorder %s212, %s213
      %p224 = scmp.eq.s32.totalorder %s27, 0
      %p225 = por %p223, %p224
      %p226 = scmp.ne.s32.totalorder %s212, %s213
      %p227 = scmp.eq.s32.totalorder %s28, 1
      %p228 = por %p226, %p227
      %p230 = scmp.ne.s32.totalorder %s213, %s229
      %p231 = scmp.eq.s32.totalorder %s28, 0
      %p232 = por %p230, %p231
      %p233 = scmp.le.s32.totalorder 1, %s22
      %p234 = scmp.lt.s32.totalorder %s22, 3
      %p235 = pnand %p233, %p234
      %p236 = pneg %p235
      // Predicated region
      $region9: #{fused_forward.1} parent=5 // pred_check
        _
      $region10: #{fused_forward.1} parent=5 // pred_check_branch
        %238 = sbr.rel (%p235) target = $region12
      $region11: #{fused_forward.1} parent=5 // pred_region
        %s239 = ssub.s32 %s22, 1
        // Predicated region
        $region13: #{fused_forward.1} parent=11 // pred_check
          %p240 = pneg %p43
        $region14: #{fused_forward.1} parent=11 // pred_check_branch
          %242 = sbr.rel (%p240) target = $region16
        $region15: #{fused_forward.1} parent=11 // pred_region
          _
        $region16: #{fused_forward.1} parent=11 // pred_fallthru
          _
      $region12: #{fused_forward.1} parent=5 // pred_fallthru
        _
      %p243 = scmp.lt.s32.totalorder %s22, 2
      // Predicated region
      $region17: #{fused_forward.1} parent=5 // pred_check
        %p244 = pneg %p243
      $region18: #{fused_forward.1} parent=5 // pred_check_branch
        %246 = sbr.rel (%p244) target = $region20
      $region19: #{fused_forward.1} parent=5 // pred_region
        // Predicated region
        $region21: #{fused_forward.1} parent=19 // pred_check
          %p247 = pneg %p63
        $region22: #{fused_forward.1} parent=19 // pred_check_branch
          %249 = sbr.rel (%p247) target = $region24
        $region23: #{fused_forward.1} parent=19 // pred_region
          %s250 = sand.u32 %s53, 1
          %s251 = scalar_lea.sflag [#allocation3], %s250
          %s252 = sand.u32 %s53, 1
          %s253 = smul.addr %s252, 16
          %s254 = scalar_lea.vmem [#allocation2], %s253
          %s256 = ssub.s32 256, 256
          %257 = vsyncadd %s251, %s256
          %s258 = smul.addr %s22, 2
          %s259 = smul.addr %s258, 128
          %s260 = scalar_lea.hbm %s1, %s259
          %s261 = sshll.u32 %s254, 4
          %s262 = int_to_ptr.vmem [resolvable:$true] %s261
          %267 = dma.hbm_to_vmem [thread:$0]  %s260, 256, %s262, %s251, 128, 128, 8
        $region24: #{fused_forward.1} parent=19 // pred_fallthru
          _
        // Predicated region
        $region25: #{fused_forward.1} parent=19 // pred_check
          %p268 = pneg %p89
        $region26: #{fused_forward.1} parent=19 // pred_check_branch
          %270 = sbr.rel (%p268) target = $region28
        $region27: #{fused_forward.1} parent=19 // pred_region
          %p271 = scmp.lt.s32.totalorder %s22, 1
          %s272 = scalar_select %p271, %s22, 1
          %s273 = scalar_lea.vmem %s2, %s272
        $region28: #{fused_forward.1} parent=19 // pred_fallthru
          _
        // Predicated region
        $region29: #{fused_forward.1} parent=19 // pred_check
          %p274 = pneg %p115
        $region30: #{fused_forward.1} parent=19 // pred_check_branch
          %276 = sbr.rel (%p274) target = $region32
        $region31: #{fused_forward.1} parent=19 // pred_region
          %s277 = sand.u32 %s22, 1
          %s278 = scalar_lea.sflag [#allocation5], %s277
          %s279 = sand.u32 %s105, 1
          %s280 = smul.addr %s279, 32
          %s281 = scalar_lea.vmem [#allocation4], %s280
          %s283 = ssub.s32 512, 512
          %284 = vsyncadd %s278, %s283
          %s285 = smul.addr %s22, 4
          %s286 = smul.addr %s285, 128
          %s287 = scalar_lea.hbm %s3, %s286
          %s288 = sshll.u32 %s281, 4
          %s289 = int_to_ptr.vmem [resolvable:$true] %s288
          %294 = dma.hbm_to_vmem [thread:$0]  %s287, 512, %s289, %s278, 128, 128, 8
        $region32: #{fused_forward.1} parent=19 // pred_fallthru
          _
        // Predicated region
        $region33: #{fused_forward.1} parent=19 // pred_check
          %p295 = pneg %p141
        $region34: #{fused_forward.1} parent=19 // pred_check_branch
          %297 = sbr.rel (%p295) target = $region36
        $region35: #{fused_forward.1} parent=19 // pred_region
          %s298 = sand.u32 %s22, 1
          %s299 = scalar_lea.sflag [#allocation5], %s298
          %s300 = sand.u32 %s131, 1
          %s301 = scalar_lea.vmem [#allocation6], %s300
          %s303 = ssub.s32 16, 16
          %304 = vsyncadd %s299, %s303
          %s305 = smul.addr %s22, 16
          %s306 = scalar_lea.hbm %s4, %s305
          %s308 = sshll.u32 %s301, 4
          %s309 = int_to_ptr.vmem [resolvable:$true] %s308
          %311 = dma.hbm_to_vmem [thread:$0]  %s306, 16, %s309, %s299
        $region36: #{fused_forward.1} parent=19 // pred_fallthru
          _
        // Predicated region
        $region37: #{fused_forward.1} parent=19 // pred_check
          %p312 = pneg %p167
        $region38: #{fused_forward.1} parent=19 // pred_check_branch
          %314 = sbr.rel (%p312) target = $region40
        $region39: #{fused_forward.1} parent=19 // pred_region
          %s315 = sand.u32 %s22, 1
          %s316 = scalar_lea.sflag [#allocation8], %s315
          %s317 = sand.u32 %s157, 1
          %s318 = smul.addr %s317, 32
          %s319 = scalar_lea.vmem [#allocation7], %s318
          %s321 = ssub.s32 512, 512
          %322 = vsyncadd %s316, %s321
          %s323 = smul.addr %s22, 4
          %s324 = smul.addr %s323, 128
          %s325 = scalar_lea.hbm %s5, %s324
          %s326 = sshll.u32 %s319, 4
          %s327 = int_to_ptr.vmem [resolvable:$true] %s326
          %332 = dma.hbm_to_vmem [thread:$0]  %s325, 512, %s327, %s316, 128, 128, 8
        $region40: #{fused_forward.1} parent=19 // pred_fallthru
          _
        // Predicated region
        $region41: #{fused_forward.1} parent=19 // pred_check
          %p333 = pneg %p193
        $region42: #{fused_forward.1} parent=19 // pred_check_branch
          %335 = sbr.rel (%p333) target = $region44
        $region43: #{fused_forward.1} parent=19 // pred_region
          %s336 = sand.u32 %s22, 1
          %s337 = scalar_lea.sflag [#allocation8], %s336
          %s338 = sand.u32 %s183, 1
          %s339 = scalar_lea.vmem [#allocation9], %s338
          %s341 = ssub.s32 16, 16
          %342 = vsyncadd %s337, %s341
          %s343 = smul.addr %s22, 16
          %s344 = scalar_lea.hbm %s6, %s343
          %s346 = sshll.u32 %s339, 4
          %s347 = int_to_ptr.vmem [resolvable:$true] %s346
          %349 = dma.hbm_to_vmem [thread:$0]  %s344, 16, %s347, %s337
        $region44: #{fused_forward.1} parent=19 // pred_fallthru
          _
      $region20: #{fused_forward.1} parent=5 // pred_fallthru
        _
      %p350 = scmp.le.s32.totalorder 1, %s22
      %p351 = scmp.lt.s32.totalorder %s22, 3
      %p352 = pnand %p350, %p351
      %p353 = pneg %p352
      // Predicated region
      $region45: #{fused_forward.1} parent=5 // pred_check
        _
      $region46: #{fused_forward.1} parent=5 // pred_check_branch
        %355 = sbr.rel (%p352) target = $region48
      $region47: #{fused_forward.1} parent=5 // pred_region
        %s356 = ssub.s32 %s22, 1
        %s357 = sand.u32 %s56, 1
        %s358 = scalar_lea.sflag [#allocation3], %s357
        %s359 = sand.u32 %s56, 1
        %s360 = smul.addr %s359, 16
        %s361 = scalar_lea.vmem [#allocation2], %s360
        // Predicated region
        $region49: #{fused_forward.1} parent=47 // pred_check
          %p362 = pneg %p69
        $region50: #{fused_forward.1} parent=47 // pred_check_branch
          %364 = sbr.rel (%p362) target = $region52
        $region51: #{fused_forward.1} parent=47 // pred_region
          %365 = dma.done %s358, 256
        $region52: #{fused_forward.1} parent=47 // pred_fallthru
          _
        %s366 = sand.u32 %s27, 1
        %s367 = scalar_lea.sflag [#allocation5], %s366
        %s368 = sand.u32 %s108, 1
        %s369 = smul.addr %s368, 32
        %s370 = scalar_lea.vmem [#allocation4], %s369
        // Predicated region
        $region53: #{fused_forward.1} parent=47 // pred_check
          %p371 = pneg %p121
        $region54: #{fused_forward.1} parent=47 // pred_check_branch
          %373 = sbr.rel (%p371) target = $region56
        $region55: #{fused_forward.1} parent=47 // pred_region
          %374 = dma.done %s367, 512
        $region56: #{fused_forward.1} parent=47 // pred_fallthru
          _
        %s375 = sand.u32 %s27, 1
        %s376 = scalar_lea.sflag [#allocation5], %s375
        %s377 = sand.u32 %s134, 1
        %s378 = scalar_lea.vmem [#allocation6], %s377
        // Predicated region
        $region57: #{fused_forward.1} parent=47 // pred_check
          %p379 = pneg %p147
        $region58: #{fused_forward.1} parent=47 // pred_check_branch
          %381 = sbr.rel (%p379) target = $region60
        $region59: #{fused_forward.1} parent=47 // pred_region
          %382 = dma.done %s376, 16
        $region60: #{fused_forward.1} parent=47 // pred_fallthru
          _
        %s383 = sand.u32 %s27, 1
        %s384 = scalar_lea.sflag [#allocation8], %s383
        %s385 = sand.u32 %s160, 1
        %s386 = smul.addr %s385, 32
        %s387 = scalar_lea.vmem [#allocation7], %s386
        // Predicated region
        $region61: #{fused_forward.1} parent=47 // pred_check
          %p388 = pneg %p173
        $region62: #{fused_forward.1} parent=47 // pred_check_branch
          %390 = sbr.rel (%p388) target = $region64
        $region63: #{fused_forward.1} parent=47 // pred_region
          %391 = dma.done %s384, 512
        $region64: #{fused_forward.1} parent=47 // pred_fallthru
          _
        %s392 = sand.u32 %s27, 1
        %s393 = scalar_lea.sflag [#allocation8], %s392
        %s394 = sand.u32 %s186, 1
        %s395 = scalar_lea.vmem [#allocation9], %s394
        // Predicated region
        $region65: #{fused_forward.1} parent=47 // pred_check
          %p396 = pneg %p199
        $region66: #{fused_forward.1} parent=47 // pred_check_branch
          %398 = sbr.rel (%p396) target = $region68
        $region67: #{fused_forward.1} parent=47 // pred_region
          %399 = dma.done %s393, 16
        $region68: #{fused_forward.1} parent=47 // pred_fallthru
          _
        %p400 = pneg %p43
        %p401 = pneg %p40
        %s402 = sand.u32 %s56, 1
        %s403 = scalar_lea.sflag [#allocation3], %s402
        %s404 = sand.u32 %s56, 1
        %s405 = smul.addr %s404, 16
        %s406 = scalar_lea.vmem [#allocation2], %s405
        %p407 = pneg %p69
        %p408 = pneg %p66
        %p409 = scmp.lt.s32.totalorder %s27, 1
        %s410 = scalar_select %p409, %s27, 1
        %s411 = scalar_lea.vmem %s2, %s410
        %p412 = pneg %p95
        %p413 = pneg %p92
        %s414 = sand.u32 %s27, 1
        %s415 = scalar_lea.sflag [#allocation5], %s414
        %s416 = sand.u32 %s108, 1
        %s417 = smul.addr %s416, 32
        %s418 = scalar_lea.vmem [#allocation4], %s417
        %p419 = pneg %p121
        %p420 = pneg %p118
        %s421 = sand.u32 %s27, 1
        %s422 = scalar_lea.sflag [#allocation5], %s421
        %s423 = sand.u32 %s134, 1
        %s424 = scalar_lea.vmem [#allocation6], %s423
        %p425 = pneg %p147
        %p426 = pneg %p144
        %s427 = sand.u32 %s27, 1
        %s428 = scalar_lea.sflag [#allocation8], %s427
        %s429 = sand.u32 %s160, 1
        %s430 = smul.addr %s429, 32
        %s431 = scalar_lea.vmem [#allocation7], %s430
        %p432 = pneg %p173
        %p433 = pneg %p170
        %s434 = sand.u32 %s27, 1
        %s435 = scalar_lea.sflag [#allocation8], %s434
        %s436 = sand.u32 %s186, 1
        %s437 = scalar_lea.vmem [#allocation9], %s436
        %p438 = pneg %p199
        %p439 = pneg %p196
        %p440 = pneg %p225
        %p441 = pneg %p222
        %p442 = scmp.lt.s32.totalorder %s27, 1
        %s443 = scalar_select %p442, %s27, 1
        %s444 = smul.addr %s443, 8
        %s445 = scalar_lea.vmem %s7, %s444
        %p446 = scmp.lt.s32.totalorder %s27, 1
        %s447 = scalar_select %p446, %s27, 1
        %s448 = scalar_lea.vmem %s2, %s447
        %p449 = scmp.lt.s32.totalorder %s27, 1
        %s450 = scalar_select %p449, %s27, 1
        %s451 = smul.addr %s450, 8
        %s452 = scalar_lea.vmem %s7, %s451
        %v453 = vld [vmem:[%s0] sm:$0xff]
        %v454 = vld [vmem:[%s361] sm:$0xff]
        %v455 = vld [vmem:[%s361 + $0x8] sm:$0xff]
        %v456 = vld [vmem:[%s448] sm:$0x1]
        %v458 = vlaneseq
        %v459 = vshrl.u32 %v458, 7
        %v460 = vsub.s32 0, %v459
        %v461 = vrot.slane %v456, %v460
        %vm463 = vcmask 130048
        %v465 = vsel %vm463, %v453, 0
        %467 = vmatprep.subr.mxu0 0.0
        %468 = vmatpush1.msra.mxu0 0.0
        %469 = vmatprep.subr.mxu0 0.0
        %470 = vmatpush1.msra.mxu0 0.0
        %471 = vmatprep.subr.mxu0 0.0
        %472 = vmatpush1.msra.mxu0 0.0
        %473 = vmatprep.subr.mxu0 0.0
        %474 = vmatpush1.msra.mxu0 0.0
        %475 = vmatprep.subr.mxu0 0.0
        %476 = vmatpush1.msra.mxu0 0.0
        %477 = vmatprep.subr.mxu0 0.0
        %478 = vmatpush1.msra.mxu0 0.0
        %479 = vmatprep.subr.mxu0 0.0
        %480 = vmatpush1.msra.mxu0 0.0
        %481 = vmatprep.subr.mxu0 0.0
        %482 = vmatpush1.msra.mxu0 0.0
        %483 = vmatprep.subr.mxu0 0.0
        %484 = vmatpush1.msra.mxu0 0.0
        %485 = vmatprep.subr.mxu0 0.0
        %486 = vmatpush1.msra.mxu0 0.0
        %487 = vmatprep.subr.mxu0 0.0
        %488 = vmatpush1.msra.mxu0 0.0
        %489 = vmatprep.subr.mxu0 0.0
        %490 = vmatpush1.msra.mxu0 0.0
        %491 = vmatprep.subr.mxu0 0.0
        %492 = vmatpush1.msra.mxu0 0.0
        %493 = vmatprep.subr.mxu0 0.0
        %494 = vmatpush1.msra.mxu0 0.0
        %495 = vmatprep.subr.mxu0 0.0
        %496 = vmatpush1.msra.mxu0 %v455
        %497 = vmatprep.subr.mxu0 0.0
        %498 = vmatpush1.msra.mxu0 %v454
        %499 = vmatprep.subr.mxu0 0.0
        %500 = vmatpush2.msra.mxu0 0.0
        %501 = vmatprep.subr.mxu0 0.0
        %502 = vmatpush2.msra.mxu0 0.0
        %503 = vmatprep.subr.mxu0 0.0
        %504 = vmatpush2.msra.mxu0 0.0
        %505 = vmatprep.subr.mxu0 0.0
        %506 = vmatpush2.msra.mxu0 0.0
        %507 = vmatprep.subr.mxu0 0.0
        %508 = vmatpush2.msra.mxu0 0.0
        %509 = vmatprep.subr.mxu0 0.0
        %510 = vmatpush2.msra.mxu0 0.0
        %511 = vmatprep.subr.mxu0 0.0
        %512 = vmatpush2.msra.mxu0 0.0
        %513 = vmatprep.subr.mxu0 0.0
        %514 = vmatpush2.msra.mxu0 0.0
        %515 = vmatprep.subr.mxu0 0.0
        %516 = vmatpush2.msra.mxu0 0.0
        %517 = vmatprep.subr.mxu0 0.0
        %518 = vmatpush2.msra.mxu0 0.0
        %519 = vmatprep.subr.mxu0 0.0
        %520 = vmatpush2.msra.mxu0 0.0
        %521 = vmatprep.subr.mxu0 0.0
        %522 = vmatpush2.msra.mxu0 0.0
        %523 = vmatprep.subr.mxu0 0.0
        %524 = vmatpush2.msra.mxu0 0.0
        %525 = vmatprep.subr.mxu0 0.0
        %526 = vmatpush2.msra.mxu0 0.0
        %527 = vmatprep.subr.mxu0 0.0
        %528 = vmatpush2.msra.mxu0 0.0
        %529 = vmatprep.subr.mxu0 0.0
        %530 = vmatpush2.msra.mxu0 0.0
        %531 = vmatprep.mubr.f32.mxu0 0.0
        %532 = vmatmul.mubr.f32.gmra.mxu0 %v465
        %v533 = vpop.f32.mrf.mxu0
        %v534 = vadd.f32 %v461, %v533
        %v535 = vpop.f32.mrf.mxu0
        %536 = vdwg.mxu0
        %v537 = vtanh.pop %v534
        %v538 = vld [vmem:[%s370] sm:$0xff]
        %v539 = vld [vmem:[%s370 + $0x8] sm:$0xff]
        %v540 = vld [vmem:[%s370 + $0x10] sm:$0xff]
        %v541 = vld [vmem:[%s370 + $0x18] sm:$0xff]
        %v542 = vld [vmem:[%s378] sm:$0x1]
        %v544 = vlaneseq
        %v545 = vshrl.u32 %v544, 7
        %v546 = vsub.s32 0, %v545
        %v547 = vrot.slane %v542, %v546
        %vm549 = vcmask 261120
        %v551 = vsel %vm549, %v537, 0
        %553 = vmatprep.subr.mxu0 0.0
        %554 = vmatpush1.msra.mxu0 0.0
        %555 = vmatprep.subr.mxu0 0.0
        %556 = vmatpush1.msra.mxu0 0.0
        %557 = vmatprep.subr.mxu0 0.0
        %558 = vmatpush1.msra.mxu0 0.0
        %559 = vmatprep.subr.mxu0 0.0
        %560 = vmatpush1.msra.mxu0 0.0
        %561 = vmatprep.subr.mxu0 0.0
        %562 = vmatpush1.msra.mxu0 0.0
        %563 = vmatprep.subr.mxu0 0.0
        %564 = vmatpush1.msra.mxu0 0.0
        %565 = vmatprep.subr.mxu0 0.0
        %566 = vmatpush1.msra.mxu0 0.0
        %567 = vmatprep.subr.mxu0 0.0
        %568 = vmatpush1.msra.mxu0 0.0
        %569 = vmatprep.subr.mxu0 0.0
        %570 = vmatpush1.msra.mxu0 0.0
        %571 = vmatprep.subr.mxu0 0.0
        %572 = vmatpush1.msra.mxu0 0.0
        %573 = vmatprep.subr.mxu0 0.0
        %574 = vmatpush1.msra.mxu0 0.0
        %575 = vmatprep.subr.mxu0 0.0
        %576 = vmatpush1.msra.mxu0 0.0
        %577 = vmatprep.subr.mxu0 0.0
        %578 = vmatpush1.msra.mxu0 %v541
        %579 = vmatprep.subr.mxu0 0.0
        %580 = vmatpush1.msra.mxu0 %v540
        %581 = vmatprep.subr.mxu0 0.0
        %582 = vmatpush1.msra.mxu0 %v539
        %583 = vmatprep.subr.mxu0 0.0
        %584 = vmatpush1.msra.mxu0 %v538
        %585 = vmatprep.subr.mxu0 0.0
        %586 = vmatpush2.msra.mxu0 0.0
        %587 = vmatprep.subr.mxu0 0.0
        %588 = vmatpush2.msra.mxu0 0.0
        %589 = vmatprep.subr.mxu0 0.0
        %590 = vmatpush2.msra.mxu0 0.0
        %591 = vmatprep.subr.mxu0 0.0
        %592 = vmatpush2.msra.mxu0 0.0
        %593 = vmatprep.subr.mxu0 0.0
        %594 = vmatpush2.msra.mxu0 0.0
        %595 = vmatprep.subr.mxu0 0.0
        %596 = vmatpush2.msra.mxu0 0.0
        %597 = vmatprep.subr.mxu0 0.0
        %598 = vmatpush2.msra.mxu0 0.0
        %599 = vmatprep.subr.mxu0 0.0
        %600 = vmatpush2.msra.mxu0 0.0
        %601 = vmatprep.subr.mxu0 0.0
        %602 = vmatpush2.msra.mxu0 0.0
        %603 = vmatprep.subr.mxu0 0.0
        %604 = vmatpush2.msra.mxu0 0.0
        %605 = vmatprep.subr.mxu0 0.0
        %606 = vmatpush2.msra.mxu0 0.0
        %607 = vmatprep.subr.mxu0 0.0
        %608 = vmatpush2.msra.mxu0 0.0
        %609 = vmatprep.subr.mxu0 0.0
        %610 = vmatpush2.msra.mxu0 0.0
        %611 = vmatprep.subr.mxu0 0.0
        %612 = vmatpush2.msra.mxu0 0.0
        %613 = vmatprep.subr.mxu0 0.0
        %614 = vmatpush2.msra.mxu0 0.0
        %615 = vmatprep.subr.mxu0 0.0
        %616 = vmatpush2.msra.mxu0 0.0
        %617 = vmatprep.mubr.f32.mxu0 0.0
        %618 = vmatmul.mubr.f32.gmra.mxu0 %v551
        %v619 = vpop.f32.mrf.mxu0
        %v620 = vadd.f32 %v547, %v619
        %v621 = vpop.f32.mrf.mxu0
        %622 = vdwg.mxu0
        %v623 = vtanh.pop %v620
        %v624 = vld [vmem:[%s387] sm:$0xff]
        %v625 = vld [vmem:[%s387 + $0x8] sm:$0xff]
        %v626 = vld [vmem:[%s387 + $0x10] sm:$0xff]
        %v627 = vld [vmem:[%s387 + $0x18] sm:$0xff]
        %v628 = vld [vmem:[%s395] sm:$0x1]
        %v630 = vlaneseq
        %v631 = vshrl.u32 %v630, 7
        %v632 = vsub.s32 0, %v631
        %v633 = vrot.slane %v628, %v632
        %v636 = vsel %vm549, %v623, 0
        %638 = vmatprep.subr.mxu0 0.0
        %639 = vmatpush1.msra.mxu0 0.0
        %640 = vmatprep.subr.mxu0 0.0
        %641 = vmatpush1.msra.mxu0 0.0
        %642 = vmatprep.subr.mxu0 0.0
        %643 = vmatpush1.msra.mxu0 0.0
        %644 = vmatprep.subr.mxu0 0.0
        %645 = vmatpush1.msra.mxu0 0.0
        %646 = vmatprep.subr.mxu0 0.0
        %647 = vmatpush1.msra.mxu0 0.0
        %648 = vmatprep.subr.mxu0 0.0
        %649 = vmatpush1.msra.mxu0 0.0
        %650 = vmatprep.subr.mxu0 0.0
        %651 = vmatpush1.msra.mxu0 0.0
        %652 = vmatprep.subr.mxu0 0.0
        %653 = vmatpush1.msra.mxu0 0.0
        %654 = vmatprep.subr.mxu0 0.0
        %655 = vmatpush1.msra.mxu0 0.0
        %656 = vmatprep.subr.mxu0 0.0
        %657 = vmatpush1.msra.mxu0 0.0
        %658 = vmatprep.subr.mxu0 0.0
        %659 = vmatpush1.msra.mxu0 0.0
        %660 = vmatprep.subr.mxu0 0.0
        %661 = vmatpush1.msra.mxu0 0.0
        %662 = vmatprep.subr.mxu0 0.0
        %663 = vmatpush1.msra.mxu0 %v627
        %664 = vmatprep.subr.mxu0 0.0
        %665 = vmatpush1.msra.mxu0 %v626
        %666 = vmatprep.subr.mxu0 0.0
        %667 = vmatpush1.msra.mxu0 %v625
        %668 = vmatprep.subr.mxu0 0.0
        %669 = vmatpush1.msra.mxu0 %v624
        %670 = vmatprep.subr.mxu0 0.0
        %671 = vmatpush2.msra.mxu0 0.0
        %672 = vmatprep.subr.mxu0 0.0
        %673 = vmatpush2.msra.mxu0 0.0
        %674 = vmatprep.subr.mxu0 0.0
        %675 = vmatpush2.msra.mxu0 0.0
        %676 = vmatprep.subr.mxu0 0.0
        %677 = vmatpush2.msra.mxu0 0.0
        %678 = vmatprep.subr.mxu0 0.0
        %679 = vmatpush2.msra.mxu0 0.0
        %680 = vmatprep.subr.mxu0 0.0
        %681 = vmatpush2.msra.mxu0 0.0
        %682 = vmatprep.subr.mxu0 0.0
        %683 = vmatpush2.msra.mxu0 0.0
        %684 = vmatprep.subr.mxu0 0.0
        %685 = vmatpush2.msra.mxu0 0.0
        %686 = vmatprep.subr.mxu0 0.0
        %687 = vmatpush2.msra.mxu0 0.0
        %688 = vmatprep.subr.mxu0 0.0
        %689 = vmatpush2.msra.mxu0 0.0
        %690 = vmatprep.subr.mxu0 0.0
        %691 = vmatpush2.msra.mxu0 0.0
        %692 = vmatprep.subr.mxu0 0.0
        %693 = vmatpush2.msra.mxu0 0.0
        %694 = vmatprep.subr.mxu0 0.0
        %695 = vmatpush2.msra.mxu0 0.0
        %696 = vmatprep.subr.mxu0 0.0
        %697 = vmatpush2.msra.mxu0 0.0
        %698 = vmatprep.subr.mxu0 0.0
        %699 = vmatpush2.msra.mxu0 0.0
        %700 = vmatprep.subr.mxu0 0.0
        %701 = vmatpush2.msra.mxu0 0.0
        %702 = vmatprep.mubr.f32.mxu0 0.0
        %703 = vmatmul.mubr.f32.gmra.mxu0 %v636
        %v704 = vpop.f32.mrf.mxu0
        %v705 = vadd.f32 %v633, %v704
        %v706 = vpop.f32.mrf.mxu0
        %707 = vdwg.mxu0
        %708 = vst [vmem:[%s452] sm:$0xff] %v705
        %p709 = scmp.lt.s32.totalorder %s27, 1
        %s710 = scalar_select %p709, %s27, 1
        %s711 = smul.addr %s710, 8
        %s712 = scalar_lea.vmem %s7, %s711
        // Predicated region
        $region69: #{fused_forward.1} parent=47 // pred_check
          %p713 = pneg %p222
        $region70: #{fused_forward.1} parent=47 // pred_check_branch
          %715 = sbr.rel (%p713) target = $region72
        $region71: #{fused_forward.1} parent=47 // pred_region
          _
        $region72: #{fused_forward.1} parent=47 // pred_fallthru
          _
      $region48: #{fused_forward.1} parent=5 // pred_fallthru
        _
      %p716 = scmp.le.s32.totalorder 2, %s22
      // Predicated region
      $region73: #{fused_forward.1} parent=5 // pred_check
        %p717 = pneg %p716
      $region74: #{fused_forward.1} parent=5 // pred_check_branch
        %719 = sbr.rel (%p717) target = $region76
      $region75: #{fused_forward.1} parent=5 // pred_region
        %s720 = ssub.s32 %s22, 2
        // Predicated region
        $region77: #{fused_forward.1} parent=75 // pred_check
          %p721 = pneg %p228
        $region78: #{fused_forward.1} parent=75 // pred_check_branch
          %723 = sbr.rel (%p721) target = $region80
        $region79: #{fused_forward.1} parent=75 // pred_region
          %p724 = scmp.lt.s32.totalorder %s28, 1
          %s725 = scalar_select %p724, %s28, 1
          %s726 = smul.addr %s725, 8
          %s727 = scalar_lea.vmem %s7, %s726
        $region80: #{fused_forward.1} parent=75 // pred_fallthru
          _
      $region76: #{fused_forward.1} parent=5 // pred_fallthru
        _
    $region6: #{fused_forward.1} parent=1 // loop_footer
      %s26 = sadd.s32 1, %s22
    $region7: #{fused_forward.1} parent=1 // loop_footer_branch
      %21 = sbr.rel target = $region3
    $region8: #{fused_forward.1} parent=1 // loop_exit
      _
    %728 = vsyncpa [#allocation3], 1
    %s729 = scalar_lea.sflag [#allocation3], 1
    %730 = vsyncpa %s729, 1
    %731 = vsyncpa [#allocation5], 1
    %s732 = scalar_lea.sflag [#allocation5], 1
    %733 = vsyncpa %s732, 1
    %734 = vsyncpa [#allocation8], 1
    %s735 = scalar_lea.sflag [#allocation8], 1
    %736 = vsyncpa %s735, 1

</llo_original>
